<compile_context>
chip_gen: v7x
topology: tpu7x:2x2x1
jax: 0.10.0
libtpu: 0.0.40
codegen_flags: <defaults>
</compile_context>

<pallas_src>
import functools

import jax
import jax.numpy as jnp
from jax import lax
from jax.experimental import pallas as pl
from jax.experimental.pallas import tpu as pltpu


def _vector_sigmoid_log_kernel(x_ref, y_ref, *, ep, s, low_precision_mul):
    # x_ref / y_ref: (tile_rows, 2*s).  Even component in lanes [:s],
    # odd component in lanes [s:].
    xe = x_ref[:, :s]
    xo = x_ref[:, s:]
    xe32 = xe.astype(jnp.float32)
    xo32 = xo.astype(jnp.float32)

    # Pair magnitude and scaling factor always in f32 (rsqrt runs on the EUP).
    l2 = xe32 * xe32 + xo32 * xo32 + jnp.float32(ep)
    factor = lax.rsqrt(jnp.minimum(l2, jnp.float32(1.0)))

    if low_precision_mul:
        # bf16/fp16 inputs: do the final multiply + store in the native dtype
        # (halves VALU traffic and block-sized temporaries on v6e/v7x).
        f = factor.astype(y_ref.dtype)
        y_ref[:, :s] = xe * f
        y_ref[:, s:] = xo * f
    else:
        y_ref[:, :s] = (xe32 * factor).astype(y_ref.dtype)
        y_ref[:, s:] = (xo32 * factor).astype(y_ref.dtype)


def _tiling_params():
    """Pick (target_block_bytes, vmem_limit_bytes) per TPU generation.

    The kernel is pure HBM streaming (1 read + 1 write, ~6 flops/elem), so the
    block only needs to be large enough to amortise the ~0.35 us per-grid-step
    cost while 2x(in) + 2x(out) pipeline buffers plus the f32 temporaries fit
    comfortably in VMEM.
    """
    vmem_cap = None
    try:
        info = pltpu.get_tpu_info()
        vmem_cap = getattr(info, "vmem_capacity_bytes", None)
    except Exception:
        vmem_cap = None
    if vmem_cap is None:
        vmem_cap = 64 * 1024 * 1024  # assume the smallest (v7x-class) VMEM

    if vmem_cap <= 80 * 1024 * 1024:
        # v7x-class: 64 MiB VMEM / 3.2 TB/s HBM.  4 MiB blocks -> ~16 MiB of
        # pipeline buffers + f32 temporaries, well inside a 48 MiB limit.
        return 4 * 1024 * 1024, 48 * 1024 * 1024
    # v5e / v6e: 128 MiB VMEM.  8 MiB blocks cut per-step overhead to <6%.
    return 8 * 1024 * 1024, 64 * 1024 * 1024


def vector_sigmoid_log(x, ep=1e-6):
    """x: [N, C, H, W] with C even (NCHW, like the PyTorch module)."""
    N, C, H, W = x.shape
    assert C % 2 == 0, "channel dimension must be even (pairs of 2-vectors)"
    S = H * W
    R = N * (C // 2)          # one row per (sample, channel-pair)
    L = 2 * S                 # lanes: even plane | odd plane

    # Copy-free reshape: NCHW is contiguous, so row r = n*(C//2) + p of x2d is
    # [x[n, 2p, :, :], x[n, 2p+1, :, :]] flattened.
    x2d = x.reshape(R, L)

    itemsize = jnp.dtype(x.dtype).itemsize
    target_block_bytes, vmem_limit_bytes = _tiling_params()

    # Dtype-native sublane multiple: 8 (f32) / 16 (bf16) / 32 (int8, fp8) rows
    # keep packed VMEM tiles dense and output stores unmasked.
    sublane = max(8, 32 // itemsize)

    bytes_per_row = L * itemsize
    rows_budget = max(1, target_block_bytes // bytes_per_row)

    if rows_budget >= R:
        if R > sublane:
            # Whole tensor would fit in one block: still split into >=2 grid
            # steps so both TensorCores of a v7x chip (megacore on v5e/v6e)
            # get a share of the DMA/compute work.
            tile_rows = pl.cdiv(pl.cdiv(R, 2), sublane) * sublane
            if tile_rows >= R:        # cannot split on a sublane boundary
                tile_rows = R
        else:
            tile_rows = R             # tiny tensor: single full-extent block
    else:
        tile_rows = max(sublane, (rows_budget // sublane) * sublane)
        # TODO(synk): for extremely large H*W (sublane * bytes_per_row >> VMEM
        # budget) a second grid axis over the lane/S dimension is needed so
        # the block is no longer bounded below by `sublane` whole rows.

    # TODO(synk): when S % 128 != 0 the odd-plane slices start mid-vreg and
    # the two half-row stores become masked; a lane-aligned fallback layout
    # would recover full store throughput for such shapes (correctness is
    # unaffected).

    grid = (pl.cdiv(R, tile_rows),)   # ragged last block is masked by Pallas
    blk = pl.BlockSpec((tile_rows, L), lambda i: (i, 0))

    low_precision_mul = jnp.dtype(x.dtype) in (
        jnp.dtype(jnp.bfloat16), jnp.dtype(jnp.float16))

    y2d = pl.pallas_call(
        functools.partial(_vector_sigmoid_log_kernel, ep=ep, s=S,
                          low_precision_mul=low_precision_mul),
        out_shape=jax.ShapeDtypeStruct((R, L), x.dtype),
        grid_spec=pltpu.PrefetchScalarGridSpec(
            num_scalar_prefetch=0,
            grid=grid,
            in_specs=[blk],
            out_specs=blk,
        ),
        compiler_params=pltpu.CompilerParams(
            dimension_semantics=("parallel",),
            vmem_limit_bytes=vmem_limit_bytes,
        ),
    )(x2d)

    # Copy-free reshape back to NCHW.
    return y2d.reshape(N, C, H, W)


def vector_sigmoid_log_ref(x, ep=1e-6):
    """Pure-JAX reference mirroring the PyTorch forward (log/exp path)."""
    x2 = x ** 2
    l2 = x2[:, 0::2] + x2[:, 1::2] + ep
    logl2 = jnp.log(l2)
    newlogl2 = jax.nn.relu(logl2)
    factor = jnp.exp((newlogl2 - logl2) * 0.5)
    return x * jnp.repeat(factor, 2, axis=1)


if __name__ == "__main__":
    # Primary check: small NCHW shape consistent with the module.
    x = jax.random.normal(jax.random.PRNGKey(0), (2, 4, 16, 16),
                          dtype=jnp.float32)
    out = jax.block_until_ready(vector_sigmoid_log(x, ep=1e-6))
    ref = vector_sigmoid_log_ref(x, ep=1e-6)
    assert out.shape == ref.shape and out.dtype == ref.dtype
    assert jnp.allclose(out, ref, atol=1e-5, rtol=1e-5)

    # Secondary check: R = 9 channel-pair rows -> 2 grid steps with a ragged
    # (masked) final block, exercising the no-pad boundary path and the
    # multi-step (dual-TensorCore) grid.
    xb = 2.0 * jax.random.normal(jax.random.PRNGKey(0), (3, 6, 16, 16),
                                 dtype=jnp.float32)
    outb = jax.block_until_ready(vector_sigmoid_log(xb, ep=1e-6))
    refb = vector_sigmoid_log_ref(xb, ep=1e-6)
    assert outb.shape == refb.shape and outb.dtype == refb.dtype
    assert jnp.allclose(outb, refb, atol=1e-5, rtol=1e-5)

    print("KERNEL_OK")
</pallas_src>

<mosaic_0001>
module attributes {stable_mosaic.version = 11 : i64} {
  func.func @_vector_sigmoid_log_kernel(%arg0: i32, %arg1: memref<4x512xf32, #tpu.memory_space<vmem>>, %arg2: memref<4x512xf32, #tpu.memory_space<vmem>>) attributes {dimension_semantics = [#tpu.dimension_semantics<parallel>], iteration_bounds = array<i64: 1>, scalar_prefetch = 0 : i64, scratch_operands = 0 : i64, tpu.core_type = #tpu.core_type<tc>, window_params = [{transform_indices = @transform_0, window_bounds = array<i64: 4, 512>}, {transform_indices = @transform_1, window_bounds = array<i64: 4, 512>}]} {
    %c0 = arith.constant 0 : index
    %c0_0 = arith.constant 0 : index
    %0 = vector.load %arg1[%c0, %c0_0] : memref<4x512xf32, #tpu.memory_space<vmem>>, vector<4x256xf32>
    %c0_1 = arith.constant 0 : index
    %c256 = arith.constant 256 : index
    %1 = vector.load %arg1[%c0_1, %c256] : memref<4x512xf32, #tpu.memory_space<vmem>>, vector<4x256xf32>
    %2 = arith.mulf %0, %0 : vector<4x256xf32>
    %3 = arith.mulf %1, %1 : vector<4x256xf32>
    %4 = arith.addf %2, %3 : vector<4x256xf32>
    %cst = arith.constant 9.99999997E-7 : f32
    %5 = vector.broadcast %cst : f32 to vector<4x256xf32>
    %6 = arith.addf %4, %5 : vector<4x256xf32>
    %cst_2 = arith.constant 1.000000e+00 : f32
    %7 = vector.broadcast %cst_2 : f32 to vector<4x256xf32>
    %8 = arith.minimumf %6, %7 : vector<4x256xf32>
    %9 = math.rsqrt %8 : vector<4x256xf32>
    %10 = arith.mulf %0, %9 : vector<4x256xf32>
    %c0_3 = arith.constant 0 : index
    %c0_4 = arith.constant 0 : index
    %11 = vector.load %arg2[%c0_3, %c0_4] : memref<4x512xf32, #tpu.memory_space<vmem>>, vector<4x256xf32>
    tpu.vector_store %arg2[%c0_3, %c0_4], %10 {strides = array<i32>} : memref<4x512xf32, #tpu.memory_space<vmem>>, vector<4x256xf32>,
    %12 = arith.mulf %1, %9 : vector<4x256xf32>
    %c0_5 = arith.constant 0 : index
    %c256_6 = arith.constant 256 : index
    %13 = vector.load %arg2[%c0_5, %c256_6] : memref<4x512xf32, #tpu.memory_space<vmem>>, vector<4x256xf32>
    tpu.vector_store %arg2[%c0_5, %c256_6], %12 {strides = array<i32>} : memref<4x512xf32, #tpu.memory_space<vmem>>, vector<4x256xf32>,
    return
  }
  func.func @transform_0(%arg0: i32) -> (i32, i32) {
    %c0_i32 = arith.constant 0 : i32
    %c0_i32_0 = arith.constant 0 : i32
    return %arg0, %c0_i32 : i32, i32
  }
  func.func @transform_1(%arg0: i32) -> (i32, i32) {
    %c0_i32 = arith.constant 0 : i32
    %c0_i32_0 = arith.constant 0 : i32
    return %arg0, %c0_i32 : i32, i32
  }
}

</mosaic_0001>

<llo_original>
// kernel: tpu_custom_call.1
$region0: #{tpu_custom_call.1}
  #allocation0 [shape = 'u32[]', space=smem, size = 0x4, offset = 0x4, fixed_abs, tag = 'smem constant byte address 0x4 - core index']
  #allocation1 [shape = 'u32[144,128]{1,0:T(1,128)}', space=vmem, size = 0x12000, scoped, tag = 'internal scratch']
  %s0 = inlined_call_operand.hbm [shape: f32[4,512], index: 0, kind: input, shape index: {}]
  %s1 = inlined_call_operand.hbm [shape: f32[4,512], index: 1, kind: output, shape index: {}]
  %s2 = sld [smem:[#allocation0]]
  $region18: #{tpu_custom_call.1} parent=0
    _
  %s4 = ssub.s32 1, %s2
  %s5 = scalar_select 0, %s4, %s2
  $region1: #{tpu_custom_call.1} parent=0
    #allocation2 [shape = 'u8[8192]{0}', space=vmem, size = 0x2000, scoped, tag = 'input window, operand 0, single buffered']
    #allocation3 [shape = 's32[1]{0}', space=sflag, size = 0x4, scoped, tag = 'scoped memory for tpu_custom_call.1']
    #allocation4 [shape = 's32[1]{0}', space=sflag, size = 0x4, scoped, tag = 'scoped memory for tpu_custom_call.1']
    #allocation5 [shape = 'u8[8192]{0}', space=vmem, size = 0x2000, scoped, tag = 'output window, operand 0, single buffered']
    %6 = vsyncpa [#allocation3], 0
    %7 = vsyncpa [#allocation4], 0
    // Predicated region
    $region2: #{tpu_custom_call.1} parent=1 // pred_check
      _
    $region3: #{tpu_custom_call.1} parent=1 // pred_check_branch
      %9 = sbr.rel (0) target = $region5
    $region4: #{tpu_custom_call.1} parent=1 // pred_region
      %s11 = ssub.s32 256, 256
      %12 = vsyncadd [#allocation3], %s11
      %s14 = sshll.u32 [#allocation2], 4
      %s15 = int_to_ptr.vmem [resolvable:$true] %s14
      %17 = dma.hbm_to_vmem [thread:$0]  %s0, 256, %s15, [#allocation3]
    $region5: #{tpu_custom_call.1} parent=1 // pred_fallthru
      _
    // Predicated region
    $region6: #{tpu_custom_call.1} parent=1 // pred_check
      _
    $region7: #{tpu_custom_call.1} parent=1 // pred_check_branch
      %19 = sbr.rel (0) target = $region9
    $region8: #{tpu_custom_call.1} parent=1 // pred_region
      %20 = dma.done [#allocation3], 256
    $region9: #{tpu_custom_call.1} parent=1 // pred_fallthru
      _
    %v21 = vld [vmem:[#allocation2] sm:$0xff]
    %v22 = vld [vmem:[#allocation2 + $0x8] sm:$0xff]
    %v23 = vmul.f32 %v21, %v21
    %v24 = vmul.f32 %v22, %v22
    %v25 = vadd.f32 %v23, %v24
    %v26 = vadd.f32 %v25, 1e-06
    %v27 = vmin.f32 %v26, 1.0
    %v28 = vrsqrt.pop %v27
    %v29 = vmul.f32 %v21, %v28
    %30 = vst [vmem:[#allocation5] sm:$0xff] %v29
    %v31 = vmul.f32 %v22, %v28
    %32 = vst [vmem:[#allocation5 + $0x8] sm:$0xff] %v31
    // Predicated region
    $region10: #{tpu_custom_call.1} parent=1 // pred_check
      _
    $region11: #{tpu_custom_call.1} parent=1 // pred_check_branch
      %34 = sbr.rel (0) target = $region13
    $region12: #{tpu_custom_call.1} parent=1 // pred_region
      %s36 = ssub.s32 256, 256
      %37 = vsyncadd [#allocation4], %s36
      %s39 = sshll.u32 [#allocation5], 4
      %s40 = int_to_ptr.vmem [resolvable:$true] %s39
      %42 = dma.vmem_to_hbm [thread:$0]  %s40, 256, %s1, [#allocation4]
    $region13: #{tpu_custom_call.1} parent=1 // pred_fallthru
      _
    // Predicated region
    $region14: #{tpu_custom_call.1} parent=1 // pred_check
      _
    $region15: #{tpu_custom_call.1} parent=1 // pred_check_branch
      %44 = sbr.rel (0) target = $region17
    $region16: #{tpu_custom_call.1} parent=1 // pred_region
      %45 = dma.done [#allocation4], 256
    $region17: #{tpu_custom_call.1} parent=1 // pred_fallthru
      _
    %46 = vsyncpa [#allocation3], 1
    %47 = vsyncpa [#allocation4], 1

</llo_original>
